<compile_context>
chip_gen: v6e
topology: v6e:2x2x1
jax: 0.10.0
libtpu: 0.0.40
codegen_flags: <defaults>
</compile_context>

<pallas_src>
import functools

import jax
import jax.numpy as jnp
from jax.experimental import pallas as pl
from jax.experimental.pallas import tpu as pltpu


def _round_up(x, m):
    return ((x + m - 1) // m) * m


def _vmem_capacity_bytes():
    """Per-core VMEM capacity; conservative 64 MiB fallback (v7x per-TC size)."""
    try:
        return int(pltpu.get_tpu_info().vmem_capacity_bytes)
    except Exception:
        return 64 * 1024 * 1024


def _choose_tm(n, dist_bytes, pos_bytes, neg_bytes):
    """Row-tile size: as large as the VMEM budget allows, >=2-4 blocks for big N."""
    cap = _vmem_capacity_bytes()
    tile_budget = cap // 2  # ~32 MiB on v7x, ~64 MiB on v5e/v6e
    # Live set per tile row: double-buffered input streams + ~3 f32 (TM, N)
    # temporaries (masked ap / an, and the f32 upcast slack on the bf16 path).
    bytes_per_row = (2 * (dist_bytes + pos_bytes + neg_bytes) + 12) * n
    tm = tile_budget // max(1, bytes_per_row)
    tm = min(tm, 512)
    # Keep >= 2-4 grid blocks when N allows, so v7x's two TensorCores both get
    # work and the Buffered(2) input pipeline has something to overlap with.
    tm = min(tm, max(256, _round_up(pl.cdiv(n, 4), 32)))
    tm = max(32, (tm // 32) * 32)          # multiple of 32: 1-byte mask tiling
    tm = min(tm, _round_up(n, 32))         # never bigger than one (padded) pass
    return int(tm)


def _bh_triplet_train_kernel(dist_ref, pos_ref, neg_ref, out_ref, *,
                             margin, n_rows, tm):
    d = dist_ref[...]                                   # (TM, N) native dtype
    pos = pos_ref[...]
    neg = neg_ref[...]
    if pos.dtype != jnp.bool_:
        pos = pos != 0
    if neg.dtype != jnp.bool_:
        neg = neg != 0

    minus_inf = jnp.array(-jnp.inf, dtype=d.dtype)
    plus_inf = jnp.array(jnp.inf, dtype=d.dtype)

    # Hardest positive (max over positives) and hardest negative (min over
    # negatives), reduced in the native dtype; only (TM,1) results hit f32.
    ap_max = jnp.max(jnp.where(pos, d, minus_inf), axis=1,
                     keepdims=True).astype(jnp.float32)      # (TM, 1)
    an_min = jnp.min(jnp.where(neg, d, plus_inf), axis=1,
                     keepdims=True).astype(jnp.float32)      # (TM, 1)

    # Valid anchor: >=1 positive (PyTorch's `dist_ap_max != -inf` test) AND the
    # global row index is inside the real array (the last block may be ragged,
    # its out-of-range rows contain unspecified data).
    row0 = pl.program_id(0) * tm
    rows = row0 + jax.lax.broadcasted_iota(jnp.int32, (tm, 1), 0)
    valid = jnp.logical_and(ap_max != -jnp.inf, rows < n_rows)   # (TM, 1)

    loss_row = jnp.maximum(ap_max - an_min + margin, 0.0)        # clamp(min=0)
    acc_row = (an_min > ap_max).astype(jnp.float32)

    # jnp.where (not multiply) so invalid / out-of-range rows contribute exactly
    # 0 even if loss_row is +/-inf or NaN there.
    loss_sum = jnp.sum(jnp.where(valid, loss_row, 0.0))
    acc_sum = jnp.sum(jnp.where(valid, acc_row, 0.0))
    valid_cnt = jnp.sum(valid.astype(jnp.float32))

    # Lane-dense (8, 128) partial tile: row 0 = loss_sum, 1 = acc_sum, 2 = count.
    row_ids = jax.lax.broadcasted_iota(jnp.int32, (8, 128), 0)
    tile = jnp.where(row_ids == 0, loss_sum, 0.0)
    tile = jnp.where(row_ids == 1, acc_sum, tile)
    tile = jnp.where(row_ids == 2, valid_cnt, tile)
    out_ref[...] = tile


def batch_hard_triplet_supp_pt1(dist, mask_pos, mask_neg, phase,
                                sample_count_min, n_samples_per_ID,
                                *, margin):
    """JAX/Pallas equivalent of BatchHardTripletSuppPt1.forward (train phase)."""
    if phase != "train":
        # TODO(synk): eval branch uses data-dependent nonzero()/split() shapes
        # (dynamic output sizes) which have no clean static Pallas equivalent.
        raise NotImplementedError("Only phase='train' is implemented in Pallas.")

    n = dist.shape[0]
    assert dist.shape == (n, n)
    assert mask_pos.shape == (n, n) and mask_neg.shape == (n, n)

    # Keep f32/bf16 distances as-is (bf16 halves the dominant stream); wider /
    # integer dtypes are upcast once.  Masks are read in their NATIVE dtype
    # inside the kernel — no wrapper-side astype pass (this kernel is purely
    # HBM-bandwidth bound, extra read+write passes roughly double its cost).
    if dist.dtype not in (jnp.float32, jnp.bfloat16):
        dist = dist.astype(jnp.float32)

    d_b = jnp.dtype(dist.dtype).itemsize
    p_b = jnp.dtype(mask_pos.dtype).itemsize
    m_b = jnp.dtype(mask_neg.dtype).itemsize
    tm = _choose_tm(n, d_b, p_b, m_b)
    n_blocks = int(pl.cdiv(n, tm))

    vmem_limit = (3 * _vmem_capacity_bytes()) // 4   # ~48 MiB v7x, ~96 MiB v5e/v6e

    kernel = functools.partial(_bh_triplet_train_kernel,
                               margin=float(margin), n_rows=n, tm=tm)

    partials = pl.pallas_call(
        kernel,
        out_shape=jax.ShapeDtypeStruct((n_blocks, 8, 128), jnp.float32),
        grid_spec=pltpu.PrefetchScalarGridSpec(
            num_scalar_prefetch=0,
            grid=(n_blocks,),
            in_specs=[
                pl.BlockSpec((tm, n), lambda i: (i, 0)),
                pl.BlockSpec((tm, n), lambda i: (i, 0)),
                pl.BlockSpec((tm, n), lambda i: (i, 0)),
            ],
            out_specs=pl.BlockSpec((None, 8, 128), lambda i: (i, 0, 0)),
        ),
        compiler_params=pltpu.CompilerParams(
            dimension_semantics=("parallel",),        # lets v7x use both TCs
            vmem_limit_bytes=int(vmem_limit),
        ),
    )(dist, mask_pos, mask_neg)

    loss_sum = jnp.sum(partials[:, 0, 0])
    acc_sum = jnp.sum(partials[:, 1, 0])
    cnt = jnp.sum(partials[:, 2, 0])
    # If cnt == 0 this yields NaN (PyTorch returns None / prints a message).
    return loss_sum / cnt, acc_sum / cnt


def _reference_train(dist, mask_pos, mask_neg, margin):
    """Plain-JAX reference mirroring the PyTorch train branch."""
    dist = dist.astype(jnp.float32)
    neg_inf = jnp.full_like(dist, -jnp.inf)
    dist_ap = jnp.where(mask_pos, dist, neg_inf)
    dist_an = jnp.where(mask_neg, -dist, neg_inf)
    ap_max = jnp.max(dist_ap, axis=1)
    an_min = -jnp.max(dist_an, axis=1)
    valid = ap_max != -jnp.inf
    cnt = jnp.sum(valid.astype(jnp.float32))
    loss_terms = jnp.maximum(ap_max - an_min + margin, 0.0)
    loss = jnp.sum(jnp.where(valid, loss_terms, 0.0)) / cnt
    acc = jnp.sum(jnp.where(valid, (an_min > ap_max).astype(jnp.float32), 0.0)) / cnt
    return loss, acc


def _make_case(key, labels, n):
    same = labels[:, None] == labels[None, :]
    eye = jnp.eye(n, dtype=bool)
    mask_pos = same & (~eye)                                    # positives (excl. self)
    mask_neg = ~same                                            # negatives
    a = jax.random.uniform(key, (n, n), dtype=jnp.float32)
    dist = (a + a.T) * 0.5
    dist = dist * (1.0 - jnp.eye(n, dtype=jnp.float32))
    return dist, mask_pos, mask_neg


if __name__ == "__main__":
    key = jax.random.PRNGKey(0)
    k1, k2 = jax.random.split(key)
    margin = 0.3

    # Case 1: 16 samples = 4 IDs x 4 samples each (every anchor has positives).
    n1 = 16
    labels1 = jnp.repeat(jnp.arange(4), 4)
    dist1, mp1, mn1 = _make_case(k1, labels1, n1)
    loss1, acc1 = batch_hard_triplet_supp_pt1(
        dist1, mp1, mn1, "train",
        sample_count_min=4, n_samples_per_ID=4, margin=margin)

    # Case 2: 20 samples, N not a multiple of the row tile (exercises the
    # in-kernel ragged-block row masking) plus 4 singleton IDs (anchors with no
    # positives -> excluded from the mean).
    n2 = 20
    labels2 = jnp.concatenate([jnp.repeat(jnp.arange(4), 4),
                               jnp.arange(4, 8)])
    dist2, mp2, mn2 = _make_case(k2, labels2, n2)
    loss2, acc2 = batch_hard_triplet_supp_pt1(
        dist2, mp2, mn2, "train",
        sample_count_min=4, n_samples_per_ID=4, margin=margin)

    jax.block_until_ready((loss1, acc1, loss2, acc2))

    ref_loss1, ref_acc1 = _reference_train(dist1, mp1, mn1, margin)
    ref_loss2, ref_acc2 = _reference_train(dist2, mp2, mn2, margin)

    assert jnp.allclose(loss1, ref_loss1, rtol=1e-5, atol=1e-5), (loss1, ref_loss1)
    assert jnp.allclose(acc1, ref_acc1, rtol=1e-5, atol=1e-5), (acc1, ref_acc1)
    assert jnp.allclose(loss2, ref_loss2, rtol=1e-5, atol=1e-5), (loss2, ref_loss2)
    assert jnp.allclose(acc2, ref_acc2, rtol=1e-5, atol=1e-5), (acc2, ref_acc2)

    print("KERNEL_OK")
</pallas_src>

<mosaic_0001>
module attributes {stable_mosaic.version = 11 : i64} {
  func.func @_bh_triplet_train_kernel(%arg0: i32, %arg1: memref<32x16xf32, #tpu.memory_space<vmem>>, %arg2: memref<32x16xi32, #tpu.memory_space<vmem>>, %arg3: memref<32x16xi32, #tpu.memory_space<vmem>>, %arg4: memref<1x8x128xf32, #tpu.memory_space<vmem>>) attributes {dimension_semantics = [#tpu.dimension_semantics<parallel>], iteration_bounds = array<i64: 1>, scalar_prefetch = 0 : i64, scratch_operands = 0 : i64, tpu.core_type = #tpu.core_type<tc>, window_params = [{transform_indices = @transform_0, window_bounds = array<i64: 32, 16>}, {transform_indices = @transform_1, window_bounds = array<i64: 32, 16>}, {transform_indices = @transform_2, window_bounds = array<i64: 32, 16>}, {transform_indices = @transform_3, window_bounds = array<i64: 1, 8, 128>}]} {
    %c0 = arith.constant 0 : index
    %c0_0 = arith.constant 0 : index
    %0 = vector.load %arg1[%c0, %c0_0] : memref<32x16xf32, #tpu.memory_space<vmem>>, vector<32x16xf32>
    %c0_1 = arith.constant 0 : index
    %c0_2 = arith.constant 0 : index
    %1 = vector.load %arg2[%c0_1, %c0_2] : memref<32x16xi32, #tpu.memory_space<vmem>>, vector<32x16xi32>
    %cst = arith.constant dense<0> : vector<32x16xi32>
    %2 = arith.cmpi ne, %1, %cst : vector<32x16xi32>
    %c0_3 = arith.constant 0 : index
    %c0_4 = arith.constant 0 : index
    %3 = vector.load %arg3[%c0_3, %c0_4] : memref<32x16xi32, #tpu.memory_space<vmem>>, vector<32x16xi32>
    %cst_5 = arith.constant dense<0> : vector<32x16xi32>
    %4 = arith.cmpi ne, %3, %cst_5 : vector<32x16xi32>
    %cst_6 = arith.constant 0xFF800000 : f32
    %5 = vector.broadcast %cst_6 : f32 to vector<32x16xf32>
    %6 = arith.select %2, %0, %5 : vector<32x16xi1>, vector<32x16xf32>
    %cst_7 = arith.constant dense<0xFF800000> : vector<32xf32>
    %7 = vector.multi_reduction <maximumf>, %6, %cst_7 [1] : vector<32x16xf32> to vector<32xf32>
    %8 = vector.shape_cast %7 : vector<32xf32> to vector<32x1xf32>
    %cst_8 = arith.constant 0x7F800000 : f32
    %9 = vector.broadcast %cst_8 : f32 to vector<32x16xf32>
    %10 = arith.select %4, %0, %9 : vector<32x16xi1>, vector<32x16xf32>
    %cst_9 = arith.constant dense<0x7F800000> : vector<32xf32>
    %11 = vector.multi_reduction <minimumf>, %10, %cst_9 [1] : vector<32x16xf32> to vector<32xf32>
    %12 = vector.shape_cast %11 : vector<32xf32> to vector<32x1xf32>
    %c32_i32 = arith.constant 32 : i32
    %13 = arith.muli %arg0, %c32_i32 : i32
    %14 = tpu.iota {dimensions = array<i32: 0>} : vector<32x1xi32>
    %15 = vector.broadcast %13 : i32 to vector<32x1xi32>
    %16 = arith.addi %15, %14 : vector<32x1xi32>
    %cst_10 = arith.constant 0xFF800000 : f32
    %17 = vector.broadcast %cst_10 : f32 to vector<32x1xf32>
    %18 = arith.cmpf one, %8, %17 : vector<32x1xf32>
    %c16_i32 = arith.constant 16 : i32
    %19 = vector.broadcast %c16_i32 : i32 to vector<32x1xi32>
    %20 = arith.cmpi slt, %16, %19 : vector<32x1xi32>
    %21 = arith.andi %18, %20 : vector<32x1xi1>
    %22 = arith.subf %8, %12 : vector<32x1xf32>
    %cst_11 = arith.constant 3.000000e-01 : f32
    %23 = vector.broadcast %cst_11 : f32 to vector<32x1xf32>
    %24 = arith.addf %22, %23 : vector<32x1xf32>
    %cst_12 = arith.constant 0.000000e+00 : f32
    %25 = vector.broadcast %cst_12 : f32 to vector<32x1xf32>
    %26 = arith.maximumf %24, %25 : vector<32x1xf32>
    %27 = arith.cmpf ogt, %12, %8 : vector<32x1xf32>
    %28 = arith.extui %27 : vector<32x1xi1> to vector<32x1xi32>
    %29 = arith.sitofp %28 : vector<32x1xi32> to vector<32x1xf32>
    %cst_13 = arith.constant 0.000000e+00 : f32
    %30 = vector.broadcast %cst_13 : f32 to vector<32x1xf32>
    %31 = arith.select %21, %26, %30 : vector<32x1xi1>, vector<32x1xf32>
    %32 = vector.shape_cast %31 : vector<32x1xf32> to vector<1x32x1xf32>
    %cst_14 = arith.constant dense<0.000000e+00> : vector<1xf32>
    %33 = vector.multi_reduction <add>, %32, %cst_14 [1, 2] : vector<1x32x1xf32> to vector<1xf32>
    %34 = vector.shape_cast %33 : vector<1xf32> to vector<1x1x1xf32>
    %35 = vector.extract %34[0, 0, 0] : f32 from vector<1x1x1xf32>
    %cst_15 = arith.constant 0.000000e+00 : f32
    %36 = vector.broadcast %cst_15 : f32 to vector<32x1xf32>
    %37 = arith.select %21, %29, %36 : vector<32x1xi1>, vector<32x1xf32>
    %38 = vector.shape_cast %37 : vector<32x1xf32> to vector<1x32x1xf32>
    %cst_16 = arith.constant dense<0.000000e+00> : vector<1xf32>
    %39 = vector.multi_reduction <add>, %38, %cst_16 [1, 2] : vector<1x32x1xf32> to vector<1xf32>
    %40 = vector.shape_cast %39 : vector<1xf32> to vector<1x1x1xf32>
    %41 = vector.extract %40[0, 0, 0] : f32 from vector<1x1x1xf32>
    %42 = arith.extui %21 : vector<32x1xi1> to vector<32x1xi32>
    %43 = arith.sitofp %42 : vector<32x1xi32> to vector<32x1xf32>
    %44 = vector.shape_cast %43 : vector<32x1xf32> to vector<1x32x1xf32>
    %cst_17 = arith.constant dense<0.000000e+00> : vector<1xf32>
    %45 = vector.multi_reduction <add>, %44, %cst_17 [1, 2] : vector<1x32x1xf32> to vector<1xf32>
    %46 = vector.shape_cast %45 : vector<1xf32> to vector<1x1x1xf32>
    %47 = vector.extract %46[0, 0, 0] : f32 from vector<1x1x1xf32>
    %48 = tpu.iota {dimensions = array<i32: 0>} : vector<8x128xi32>
    %c0_i32 = arith.constant 0 : i32
    %49 = vector.broadcast %c0_i32 : i32 to vector<8x128xi32>
    %50 = arith.cmpi eq, %48, %49 : vector<8x128xi32>
    %cst_18 = arith.constant 0.000000e+00 : f32
    %51 = vector.broadcast %35 : f32 to vector<8x128xf32>
    %52 = vector.broadcast %cst_18 : f32 to vector<8x128xf32>
    %53 = arith.select %50, %51, %52 : vector<8x128xi1>, vector<8x128xf32>
    %c1_i32 = arith.constant 1 : i32
    %54 = vector.broadcast %c1_i32 : i32 to vector<8x128xi32>
    %55 = arith.cmpi eq, %48, %54 : vector<8x128xi32>
    %56 = vector.broadcast %41 : f32 to vector<8x128xf32>
    %57 = arith.select %55, %56, %53 : vector<8x128xi1>, vector<8x128xf32>
    %c2_i32 = arith.constant 2 : i32
    %58 = vector.broadcast %c2_i32 : i32 to vector<8x128xi32>
    %59 = arith.cmpi eq, %48, %58 : vector<8x128xi32>
    %60 = vector.broadcast %47 : f32 to vector<8x128xf32>
    %61 = arith.select %59, %60, %57 : vector<8x128xi1>, vector<8x128xf32>
    %c0_19 = arith.constant 0 : index
    %c0_20 = arith.constant 0 : index
    %c0_21 = arith.constant 0 : index
    %62 = vector.load %arg4[%c0_19, %c0_20, %c0_21] : memref<1x8x128xf32, #tpu.memory_space<vmem>>, vector<1x8x128xf32>
    %63 = vector.shape_cast %62 : vector<1x8x128xf32> to vector<8x128xf32>
    %64 = vector.shape_cast %61 : vector<8x128xf32> to vector<1x8x128xf32>
    tpu.vector_store %arg4[%c0_19, %c0_20, %c0_21], %64 {strides = array<i32>} : memref<1x8x128xf32, #tpu.memory_space<vmem>>, vector<1x8x128xf32>,
    return
  }
  func.func @transform_0(%arg0: i32) -> (i32, i32) {
    %c0_i32 = arith.constant 0 : i32
    %c0_i32_0 = arith.constant 0 : i32
    return %arg0, %c0_i32 : i32, i32
  }
  func.func @transform_1(%arg0: i32) -> (i32, i32) {
    %c0_i32 = arith.constant 0 : i32
    %c0_i32_0 = arith.constant 0 : i32
    return %arg0, %c0_i32 : i32, i32
  }
  func.func @transform_2(%arg0: i32) -> (i32, i32) {
    %c0_i32 = arith.constant 0 : i32
    %c0_i32_0 = arith.constant 0 : i32
    return %arg0, %c0_i32 : i32, i32
  }
  func.func @transform_3(%arg0: i32) -> (i32, i32, i32) {
    %c0_i32 = arith.constant 0 : i32
    %c0_i32_0 = arith.constant 0 : i32
    %c0_i32_1 = arith.constant 0 : i32
    return %arg0, %c0_i32, %c0_i32_0 : i32, i32, i32
  }
}

</mosaic_0001>

<llo_original>
// kernel: tpu_custom_call.1
$region0: #{tpu_custom_call.1}
  #allocation0 [shape = 'u32[]', space=smem, size = 0x4, offset = 0x4, fixed_abs, tag = 'smem constant byte address 0x4 - core index']
  #allocation1 [shape = 'u32[144,128]{1,0:T(1,128)}', space=vmem, size = 0x12000, scoped, tag = 'internal scratch']
  %s0 = inlined_call_operand.vmem [shape: f32[16,16], index: 0, kind: input, shape index: {}]
  %s1 = inlined_call_operand.vmem [shape: s32[16,16], index: 1, kind: input, shape index: {}]
  %s2 = inlined_call_operand.vmem [shape: s32[16,16], index: 2, kind: input, shape index: {}]
  %s3 = inlined_call_operand.hbm [shape: f32[1,8,128], index: 3, kind: output, shape index: {}]
  %s4 = sld [smem:[#allocation0]]
  $region22: #{tpu_custom_call.1} parent=0
    _
  %s6 = ssub.s32 1, %s4
  %s7 = scalar_select 0, %s6, %s4
  $region1: #{tpu_custom_call.1} parent=0
    #allocation2 [shape = 'u8[4096]{0}', space=vmem, size = 0x1000, scoped, tag = 'output window, operand 0, single buffered']
    #allocation3 [shape = 's32[1]{0}', space=sflag, size = 0x4, scoped, tag = 'scoped memory for tpu_custom_call.1']
    %8 = vsyncpa [#allocation3], 0
    // Predicated region
    $region2: #{tpu_custom_call.1} parent=1 // pred_check
      _
    $region3: #{tpu_custom_call.1} parent=1 // pred_check_branch
      %10 = sbr.rel (0) target = $region5
    $region4: #{tpu_custom_call.1} parent=1 // pred_region
      _
    $region5: #{tpu_custom_call.1} parent=1 // pred_fallthru
      _
    // Predicated region
    $region6: #{tpu_custom_call.1} parent=1 // pred_check
      _
    $region7: #{tpu_custom_call.1} parent=1 // pred_check_branch
      %12 = sbr.rel (0) target = $region9
    $region8: #{tpu_custom_call.1} parent=1 // pred_region
      _
    $region9: #{tpu_custom_call.1} parent=1 // pred_fallthru
      _
    // Predicated region
    $region10: #{tpu_custom_call.1} parent=1 // pred_check
      _
    $region11: #{tpu_custom_call.1} parent=1 // pred_check_branch
      %14 = sbr.rel (0) target = $region13
    $region12: #{tpu_custom_call.1} parent=1 // pred_region
      _
    $region13: #{tpu_custom_call.1} parent=1 // pred_fallthru
      _
    %v15 = vld [vmem:[%s0] sm:$0xff]
    %v16 = vld [vmem:[%s0 + $0x8] sm:$0xff]
    %v17 = vld [vmem:[%s0 + $0x10] sm:$0xff]
    %v18 = vld [vmem:[%s0 + $0x18] sm:$0xff]
    %v19 = vld [vmem:[%s1] sm:$0xff]
    %v20 = vld [vmem:[%s1 + $0x8] sm:$0xff]
    %v21 = vld [vmem:[%s1 + $0x10] sm:$0xff]
    %v22 = vld [vmem:[%s1 + $0x18] sm:$0xff]
    %vm23 = vcmp.ne.s32.totalorder %v19, 0
    %vm24 = vcmp.ne.s32.totalorder %v20, 0
    %vm25 = vcmp.ne.s32.totalorder %v21, 0
    %vm26 = vcmp.ne.s32.totalorder %v22, 0
    %v27 = vld [vmem:[%s2] sm:$0xff]
    %v28 = vld [vmem:[%s2 + $0x8] sm:$0xff]
    %v29 = vld [vmem:[%s2 + $0x10] sm:$0xff]
    %v30 = vld [vmem:[%s2 + $0x18] sm:$0xff]
    %vm31 = vcmp.ne.s32.totalorder %v27, 0
    %vm32 = vcmp.ne.s32.totalorder %v28, 0
    %vm33 = vcmp.ne.s32.totalorder %v29, 0
    %vm34 = vcmp.ne.s32.totalorder %v30, 0
    %v35 = vsel %vm23, %v15, -inf
    %v36 = vsel %vm24, %v16, -inf
    %v37 = vsel %vm25, %v17, -inf
    %v38 = vsel %vm26, %v18, -inf
    %vm39 = vcmask 130048
    %v40 = vsel %vm39, %v35, -inf
    %41 = vmax.xlane.f32.xlu0 %v40
    %v42 = vpop.xlane.xlu0 %41
    %v43 = vsel %vm39, %v36, -inf
    %44 = vmax.xlane.f32.xlu0 %v43
    %v45 = vpop.xlane.xlu0 %44
    %v46 = vsel %vm39, %v37, -inf
    %47 = vmax.xlane.f32.xlu0 %v46
    %v48 = vpop.xlane.xlu0 %47
    %v49 = vsel %vm39, %v38, -inf
    %50 = vmax.xlane.f32.xlu0 %v49
    %v51 = vpop.xlane.xlu0 %50
    %v52 = vsel %vm31, %v15, inf
    %v53 = vsel %vm32, %v16, inf
    %v54 = vsel %vm33, %v17, inf
    %v55 = vsel %vm34, %v18, inf
    %v56 = vsel %vm39, %v52, inf
    %57 = vmin.xlane.f32.xlu0 %v56
    %v58 = vpop.xlane.xlu0 %57
    %v59 = vsel %vm39, %v53, inf
    %60 = vmin.xlane.f32.xlu0 %v59
    %v61 = vpop.xlane.xlu0 %60
    %v62 = vsel %vm39, %v54, inf
    %63 = vmin.xlane.f32.xlu0 %v62
    %v64 = vpop.xlane.xlu0 %63
    %v65 = vsel %vm39, %v55, inf
    %66 = vmin.xlane.f32.xlu0 %v65
    %v67 = vpop.xlane.xlu0 %66
    %s68 = smul.u32 0, 32
    %v69 = vlaneseq
    %v70 = vshrl.u32 %v69, 7
    %v71 = vadd.s32 %v70, 8
    %v72 = vadd.s32 %v70, 16
    %v73 = vadd.s32 %v70, 24
    %v74 = vstv %s68
    %v75 = vadd.s32 %v74, %v70
    %v76 = vadd.s32 %v74, %v71
    %v77 = vadd.s32 %v74, %v72
    %v78 = vadd.s32 %v74, %v73
    %vm79 = vcmp.ne.f32.partialorder %v42, -inf
    %vm80 = vcmp.ne.f32.partialorder %v45, -inf
    %vm81 = vcmp.ne.f32.partialorder %v48, -inf
    %vm82 = vcmp.ne.f32.partialorder %v51, -inf
    %vm83 = vcmp.lt.s32.totalorder %v75, 16
    %vm84 = vcmp.lt.s32.totalorder %v76, 16
    %vm85 = vcmp.lt.s32.totalorder %v77, 16
    %vm86 = vcmp.lt.s32.totalorder %v78, 16
    %vm87 = vmand %vm79, %vm83
    %vm88 = vmand %vm80, %vm84
    %vm89 = vmand %vm81, %vm85
    %vm90 = vmand %vm82, %vm86
    %v91 = vsub.f32 %v42, %v58
    %v92 = vsub.f32 %v45, %v61
    %v93 = vsub.f32 %v48, %v64
    %v94 = vsub.f32 %v51, %v67
    %v95 = vadd.f32 %v91, 0.3
    %v96 = vadd.f32 %v92, 0.3
    %v97 = vadd.f32 %v93, 0.3
    %v98 = vadd.f32 %v94, 0.3
    %v99 = vmax.f32 %v95, 0.0
    %v100 = vmax.f32 %v96, 0.0
    %v101 = vmax.f32 %v97, 0.0
    %v102 = vmax.f32 %v98, 0.0
    %vm103 = vcmp.gt.f32.partialorder %v58, %v42
    %vm104 = vcmp.gt.f32.partialorder %v61, %v45
    %vm105 = vcmp.gt.f32.partialorder %v64, %v48
    %vm106 = vcmp.gt.f32.partialorder %v67, %v51
    %v107 = vsel %vm103, 1, 0
    %v108 = vsel %vm104, 1, 0
    %v109 = vsel %vm105, 1, 0
    %v110 = vsel %vm106, 1, 0
    %v111 = vcvt.s32.f32 %v107
    %v112 = vcvt.s32.f32 %v108
    %v113 = vcvt.s32.f32 %v109
    %v114 = vcvt.s32.f32 %v110
    %v115 = vsel %vm87, %v99, 0.0
    %v116 = vsel %vm88, %v100, 0.0
    %v117 = vsel %vm89, %v101, 0.0
    %v118 = vsel %vm90, %v102, 0.0
    %vm119 = vcmask 7168
    %v120 = vsel %vm119, %v115, 0.0
    %v121 = vsel %vm119, %v116, 0.0
    %v122 = vadd.f32 %v120, %v121
    %v123 = vsel %vm119, %v117, 0.0
    %v124 = vadd.f32 %v122, %v123
    %v125 = vsel %vm119, %v118, 0.0
    %v126 = vadd.f32 %v124, %v125
    %127 = vadd.xlane.f32.xlu0 %v126
    %v128 = vpop.xlane.xlu0 %127
    %v129 = vrot.slane %v128, 4
    %v130 = vadd.f32 %v128, %v129
    %v131 = vrot.slane %v130, 2
    %v132 = vadd.f32 %v130, %v131
    %v133 = vrot.slane %v132, 1
    %v134 = vadd.f32 %v132, %v133
    %s135 = vtos %v134
    %v136 = vsel %vm87, %v111, 0.0
    %v137 = vsel %vm88, %v112, 0.0
    %v138 = vsel %vm89, %v113, 0.0
    %v139 = vsel %vm90, %v114, 0.0
    %v140 = vsel %vm119, %v136, 0.0
    %v141 = vsel %vm119, %v137, 0.0
    %v142 = vadd.f32 %v140, %v141
    %v143 = vsel %vm119, %v138, 0.0
    %v144 = vadd.f32 %v142, %v143
    %v145 = vsel %vm119, %v139, 0.0
    %v146 = vadd.f32 %v144, %v145
    %147 = vadd.xlane.f32.xlu0 %v146
    %v148 = vpop.xlane.xlu0 %147
    %v149 = vrot.slane %v148, 4
    %v150 = vadd.f32 %v148, %v149
    %v151 = vrot.slane %v150, 2
    %v152 = vadd.f32 %v150, %v151
    %v153 = vrot.slane %v152, 1
    %v154 = vadd.f32 %v152, %v153
    %s155 = vtos %v154
    %v156 = vsel %vm87, 1, 0
    %v157 = vsel %vm88, 1, 0
    %v158 = vsel %vm89, 1, 0
    %v159 = vsel %vm90, 1, 0
    %v160 = vcvt.s32.f32 %v156
    %v161 = vcvt.s32.f32 %v157
    %v162 = vcvt.s32.f32 %v158
    %v163 = vcvt.s32.f32 %v159
    %v164 = vsel %vm119, %v160, 0.0
    %v165 = vsel %vm119, %v161, 0.0
    %v166 = vadd.f32 %v164, %v165
    %v167 = vsel %vm119, %v162, 0.0
    %v168 = vadd.f32 %v166, %v167
    %v169 = vsel %vm119, %v163, 0.0
    %v170 = vadd.f32 %v168, %v169
    %171 = vadd.xlane.f32.xlu0 %v170
    %v172 = vpop.xlane.xlu0 %171
    %v173 = vrot.slane %v172, 4
    %v174 = vadd.f32 %v172, %v173
    %v175 = vrot.slane %v174, 2
    %v176 = vadd.f32 %v174, %v175
    %v177 = vrot.slane %v176, 1
    %v178 = vadd.f32 %v176, %v177
    %s179 = vtos %v178
    %vm180 = vcmp.eq.s32.totalorder %v70, 0
    %v181 = vstv %s135
    %v182 = vsel %vm180, %v181, 0.0
    %vm183 = vcmp.eq.s32.totalorder %v70, 1
    %v184 = vstv %s155
    %v185 = vsel %vm183, %v184, %v182
    %vm186 = vcmp.eq.s32.totalorder %v70, 2
    %v187 = vstv %s179
    %v188 = vsel %vm186, %v187, %v185
    %189 = vst [vmem:[#allocation2] sm:$0xff] %v188
    // Predicated region
    $region14: #{tpu_custom_call.1} parent=1 // pred_check
      _
    $region15: #{tpu_custom_call.1} parent=1 // pred_check_branch
      %191 = sbr.rel (0) target = $region17
    $region16: #{tpu_custom_call.1} parent=1 // pred_region
      %s193 = ssub.s32 128, 128
      %194 = vsyncadd [#allocation3], %s193
      %s196 = sshll.u32 [#allocation2], 4
      %s197 = int_to_ptr.vmem [resolvable:$true] %s196
      %199 = dma.vmem_to_hbm [thread:$0]  %s197, 128, %s3, [#allocation3]
    $region17: #{tpu_custom_call.1} parent=1 // pred_fallthru
      _
    // Predicated region
    $region18: #{tpu_custom_call.1} parent=1 // pred_check
      _
    $region19: #{tpu_custom_call.1} parent=1 // pred_check_branch
      %201 = sbr.rel (0) target = $region21
    $region20: #{tpu_custom_call.1} parent=1 // pred_region
      %202 = dma.done [#allocation3], 128
    $region21: #{tpu_custom_call.1} parent=1 // pred_fallthru
      _
    %203 = vsyncpa [#allocation3], 1

</llo_original>
